<compile_context>
chip_gen: v6e
topology: v6e:2x2x1
jax: 0.10.0
libtpu: 0.0.40
codegen_flags: <defaults>
</compile_context>

<pallas_src>
import jax
import jax.numpy as jnp
from jax.experimental import pallas as pl
from jax.experimental.pallas import tpu as pltpu


ACT_DTYPE = jnp.bfloat16      # storage dtype of activations/weights at kernel boundaries
DEFAULT_TILE_M = 2048         # rows of the flattened spatial dim per pw grid step
MAX_TILE_H = 256              # cap on 3x3 strip height (rows per grid step)


# ------------------------------- helpers ------------------------------------

def _round_up(x, m):
    return (x + m - 1) // m * m


_VMEM_LIMIT_CACHE = None


def _vmem_limit_bytes():
    """Generation-aware VMEM budget: ~5/8 of physical (40 MiB on v7x, 80 MiB on v5e/v6e)."""
    global _VMEM_LIMIT_CACHE
    if _VMEM_LIMIT_CACHE is None:
        cap = 64 << 20                      # conservative fallback (v7x physical VMEM)
        try:
            cap = int(pltpu.get_tpu_info().vmem_capacity_bytes)
        except Exception:
            pass
        _VMEM_LIMIT_CACHE = min(int(cap * 5 // 8), 96 << 20)
    return _VMEM_LIMIT_CACHE


def _compiler_params(n_grid_axes=1):
    return pltpu.CompilerParams(
        dimension_semantics=("parallel",) * n_grid_axes,
        vmem_limit_bytes=_vmem_limit_bytes())


def _nbytes(*arrays):
    return int(sum(int(a.size) * a.dtype.itemsize for a in arrays))


def _silu(y):
    return y * jax.nn.sigmoid(y)


def _fold_bn(p, cout):
    s = p["scale"].reshape(1, cout).astype(jnp.float32)
    b = p["bias"].reshape(1, cout).astype(jnp.float32)
    return s, b


def _pw_weight(p):
    cout, cin = p["w"].shape[:2]
    return p["w"].reshape(cout, cin).T            # (Cin, Cout)


# ----------------------------- pointwise kernels ------------------------------

def _pw_kernel(x_ref, w_ref, s_ref, b_ref, o_ref):
    """1x1 conv: (TILE_M, Cin) x (Cin, Cout) matmul + BN + SiLU."""
    y = jnp.dot(x_ref[...], w_ref[...], preferred_element_type=jnp.float32)
    o_ref[...] = _silu(y * s_ref[...] + b_ref[...]).astype(o_ref.dtype)


def _pw_dual_kernel(x_ref, w_ref, s_ref, b_ref, o1_ref, o2_ref):
    """Fused cv1+cv2 with an in-kernel split (only used when c_ % 128 == 0)."""
    c_ = o1_ref.shape[-1]
    y = jnp.dot(x_ref[...], w_ref[...], preferred_element_type=jnp.float32)
    y = _silu(y * s_ref[...] + b_ref[...])
    o1_ref[...] = y[:, :c_].astype(o1_ref.dtype)
    o2_ref[...] = y[:, c_:].astype(o2_ref.dtype)


def _pw_concat_kernel(m_ref, y2_ref, wa_ref, wb_ref, s_ref, b_ref, o_ref):
    """cv3 with the channel concat folded in: silu(bn(m @ Wa + y2 @ Wb))."""
    y = jnp.dot(m_ref[...], wa_ref[...], preferred_element_type=jnp.float32)
    y = y + jnp.dot(y2_ref[...], wb_ref[...], preferred_element_type=jnp.float32)
    o_ref[...] = _silu(y * s_ref[...] + b_ref[...]).astype(o_ref.dtype)


def _pw_tile_m(M, tile_m):
    # bf16 sublane packing wants multiples of 16 rows.
    return _round_up(min(tile_m, M), 16)


def _pw_call(x2d, w, s, b, cout, *, out_dtype, tile_m):
    M, cin = x2d.shape
    tm = _pw_tile_m(M, tile_m)
    grid = (pl.cdiv(M, tm),)
    cost = pl.CostEstimate(
        flops=2 * M * cin * cout,
        transcendentals=M * cout,
        bytes_accessed=_nbytes(x2d, w) + M * cout * jnp.dtype(out_dtype).itemsize)
    return pl.pallas_call(
        _pw_kernel,
        out_shape=jax.ShapeDtypeStruct((M, cout), out_dtype),
        grid=grid,
        in_specs=[pl.BlockSpec((tm, cin), lambda i: (i, 0)),
                  pl.BlockSpec((cin, cout), lambda i: (0, 0)),
                  pl.BlockSpec((1, cout), lambda i: (0, 0)),
                  pl.BlockSpec((1, cout), lambda i: (0, 0))],
        out_specs=pl.BlockSpec((tm, cout), lambda i: (i, 0)),
        compiler_params=_compiler_params(1),
        cost_estimate=cost,
    )(x2d, w, s, b)


def pw_conv_dual(x2d, p1, p2, *, out_dtype, tile_m):
    """cv1 and cv2 fused into one pallas_call (single read of x, one wide matmul).

    If c_ % 128 == 0 the split is lane-aligned and done inside the kernel.
    Otherwise one combined (M, 2*c_) output is emitted and split outside so the
    kernel epilogue stays lane-dense (no masked stores / cross-lane shuffles)."""
    M, c1 = x2d.shape
    c_ = p1["w"].shape[0]
    w12 = jnp.concatenate([_pw_weight(p1), _pw_weight(p2)], axis=1).astype(x2d.dtype)
    s1, b1 = _fold_bn(p1, c_)
    s2, b2 = _fold_bn(p2, c_)
    s12 = jnp.concatenate([s1, s2], axis=1)
    b12 = jnp.concatenate([b1, b2], axis=1)

    if c_ % 128 != 0:
        y12 = _pw_call(x2d, w12, s12, b12, 2 * c_, out_dtype=out_dtype, tile_m=tile_m)
        return y12[:, :c_], y12[:, c_:]

    tm = _pw_tile_m(M, tile_m)
    grid = (pl.cdiv(M, tm),)
    cost = pl.CostEstimate(
        flops=2 * M * c1 * 2 * c_,
        transcendentals=M * 2 * c_,
        bytes_accessed=_nbytes(x2d, w12) + 2 * M * c_ * jnp.dtype(out_dtype).itemsize)
    return pl.pallas_call(
        _pw_dual_kernel,
        out_shape=(jax.ShapeDtypeStruct((M, c_), out_dtype),
                   jax.ShapeDtypeStruct((M, c_), out_dtype)),
        grid=grid,
        in_specs=[pl.BlockSpec((tm, c1), lambda i: (i, 0)),
                  pl.BlockSpec((c1, 2 * c_), lambda i: (0, 0)),
                  pl.BlockSpec((1, 2 * c_), lambda i: (0, 0)),
                  pl.BlockSpec((1, 2 * c_), lambda i: (0, 0))],
        out_specs=(pl.BlockSpec((tm, c_), lambda i: (i, 0)),
                   pl.BlockSpec((tm, c_), lambda i: (i, 0))),
        compiler_params=_compiler_params(1),
        cost_estimate=cost,
    )(x2d, w12, s12, b12)


def pw_concat_conv(m2d, y2_2d, p, *, out_dtype, tile_m):
    """cv3 with the channel concat folded into the kernel (two inputs)."""
    M, c_ = m2d.shape
    cout = p["w"].shape[0]
    wt = p["w"].reshape(cout, 2 * c_).T.astype(m2d.dtype)     # (2*c_, cout)
    wa, wb = wt[:c_], wt[c_:]
    s, b = _fold_bn(p, cout)
    tm = _pw_tile_m(M, tile_m)
    grid = (pl.cdiv(M, tm),)
    cost = pl.CostEstimate(
        flops=2 * M * 2 * c_ * cout,
        transcendentals=M * cout,
        bytes_accessed=_nbytes(m2d, y2_2d, wt) + M * cout * jnp.dtype(out_dtype).itemsize)
    return pl.pallas_call(
        _pw_concat_kernel,
        out_shape=jax.ShapeDtypeStruct((M, cout), out_dtype),
        grid=grid,
        in_specs=[pl.BlockSpec((tm, c_), lambda i: (i, 0)),
                  pl.BlockSpec((tm, c_), lambda i: (i, 0)),
                  pl.BlockSpec((c_, cout), lambda i: (0, 0)),
                  pl.BlockSpec((c_, cout), lambda i: (0, 0)),
                  pl.BlockSpec((1, cout), lambda i: (0, 0)),
                  pl.BlockSpec((1, cout), lambda i: (0, 0))],
        out_specs=pl.BlockSpec((tm, cout), lambda i: (i, 0)),
        compiler_params=_compiler_params(1),
        cost_estimate=cost,
    )(m2d, y2_2d, wa, wb, s, b)


# --------------------- fused Bottleneck (1x1 -> 3x3) kernel -------------------

def _make_bottleneck_kernel(tile_h, W, nh, cin, cmid, cout, has_residual):
    """cv1(1x1+BN+SiLU) fused with cv2(3x3 s=1 p=1 + BN + SiLU) (+ residual).

    Operates on one H strip of one image per grid step, with a 1-row halo on
    each side fetched by manual DMA (image borders become true zero padding).
    The 3x3 conv is 9 accumulating MXU dots on shifted windows of a padded
    VMEM scratch -- no im2col, no concatenate copies."""

    def kernel(m_ref, m_hbm, w1_ref, s1_ref, b1_ref, w2_ref, s2_ref, b2_ref,
               o_ref, xpad_ref, halo_ref, sem):
        g = pl.program_id(0)
        hi = g % nh                      # strip index inside the image
        row0 = g * tile_h                # first row in the flattened (N*H) axis

        # ---- halo rows via manual DMA (skipped at image borders) ----
        if nh > 1:
            @pl.when(hi > 0)
            def _():
                cp = pltpu.make_async_copy(m_hbm.at[pl.ds(row0 - 1, 1)],
                                           halo_ref.at[pl.ds(0, 1)], sem.at[0])
                cp.start()
                cp.wait()

            @pl.when(hi < nh - 1)
            def _():
                cp = pltpu.make_async_copy(m_hbm.at[pl.ds(row0 + tile_h, 1)],
                                           halo_ref.at[pl.ds(1, 1)], sem.at[1])
                cp.start()
                cp.wait()

        s1 = s1_ref[...]
        b1 = b1_ref[...]
        w1 = w1_ref[...]

        # ---- Bottleneck.cv1 (1x1 + BN + SiLU), fused in VMEM: main strip ----
        m_main = m_ref[...]                                   # (TH, W, cin) bf16
        t_main = jnp.dot(m_main.reshape(tile_h * W, cin), w1,
                         preferred_element_type=jnp.float32)
        t_main = _silu(t_main * s1 + b1)

        # ---- cv1 on the two halo rows; image borders masked to true zero ----
        if nh > 1:
            t_halo = jnp.dot(halo_ref[...].reshape(2 * W, cin), w1,
                             preferred_element_type=jnp.float32)
            t_halo = _silu(t_halo * s1 + b1).reshape(2, W, cmid)
            top = jnp.where(hi > 0, t_halo[0:1], 0.0)
            bot = jnp.where(hi < nh - 1, t_halo[1:2], 0.0)
        else:
            top = jnp.zeros((1, W, cmid), jnp.float32)
            bot = jnp.zeros((1, W, cmid), jnp.float32)

        # ---- padded cv1 output in a persistent VMEM scratch (no concats) ----
        zcol = jnp.zeros((tile_h + 2, 1, cmid), xpad_ref.dtype)
        xpad_ref[pl.ds(0, tile_h + 2), pl.ds(0, 1), :] = zcol
        xpad_ref[pl.ds(0, tile_h + 2), pl.ds(W + 1, 1), :] = zcol
        xpad_ref[pl.ds(1, tile_h), pl.ds(1, W), :] = (
            t_main.reshape(tile_h, W, cmid).astype(xpad_ref.dtype))
        xpad_ref[pl.ds(0, 1), pl.ds(1, W), :] = top.astype(xpad_ref.dtype)
        xpad_ref[pl.ds(tile_h + 1, 1), pl.ds(1, W), :] = bot.astype(xpad_ref.dtype)

        # ---- 3x3 conv: 9 accumulating MXU dots on shifted windows ----
        acc = jnp.zeros((tile_h * W, cout), jnp.float32)
        for kh in range(3):
            for kw in range(3):
                win = xpad_ref[pl.ds(kh, tile_h), pl.ds(kw, W), :]
                acc = acc + jnp.dot(win.reshape(tile_h * W, cmid),
                                    w2_ref[kh * 3 + kw],
                                    preferred_element_type=jnp.float32)

        y = _silu(acc * s2_ref[...] + b2_ref[...])
        if has_residual:
            y = y + m_main.reshape(tile_h * W, cin).astype(jnp.float32)
        o_ref[...] = y.reshape(tile_h, W, cout).astype(o_ref.dtype)

    return kernel


def _pick_tile_h(H, W, cin, cout, act_bytes, max_tile_h):
    """Largest divisor of H that keeps the per-step working set within budget."""
    budget = _vmem_limit_bytes() // 3
    best = 1
    for th in range(1, min(H, max_tile_h) + 1):
        if H % th:
            continue
        need = (4 * th * W * max(cin, cout) * act_bytes      # in/out blocks (double-buffered)
                + (th + 2) * (W + 2) * cin * act_bytes       # padded cv1 scratch
                + th * W * cout * 4)                         # f32 accumulator
        if need <= budget:
            best = th
    return best


def bottleneck_fused(m3d, H, p1, p2, shortcut, *, out_dtype, max_tile_h=MAX_TILE_H):
    """One C3 Bottleneck: cv1(1x1) -> cv2(3x3) (+residual), fully fused.

    m3d is (N*H, W, c_) channels-last.  Tiled over H strips with a 1-row halo."""
    NH, W, cin = m3d.shape
    N = NH // H
    cmid = p1["w"].shape[0]                   # == cin (e=1.0 inside C3)
    cout = p2["w"].shape[0]
    has_res = bool(shortcut) and (cin == cout)

    w1 = _pw_weight(p1).astype(m3d.dtype)                                 # (cin, cmid)
    s1, b1 = _fold_bn(p1, cmid)
    # (O, I, 3, 3) -> (3, 3, I, O) -> (9, I, O): matches the (kh, kw) window order.
    w2 = jnp.transpose(p2["w"], (2, 3, 1, 0)).reshape(9, cmid, cout).astype(m3d.dtype)
    s2, b2 = _fold_bn(p2, cout)

    act_bytes = jnp.dtype(m3d.dtype).itemsize
    tile_h = _pick_tile_h(H, W, cmid, cout, act_bytes, max_tile_h)
    nh = H // tile_h
    grid = (N * nh,)

    kernel = _make_bottleneck_kernel(tile_h, W, nh, cin, cmid, cout, has_res)
    cost = pl.CostEstimate(
        flops=2 * NH * W * cin * cmid + 2 * NH * W * 9 * cmid * cout,
        transcendentals=NH * W * (cmid + cout),
        bytes_accessed=_nbytes(m3d, w1, w2) + NH * W * cout * jnp.dtype(out_dtype).itemsize)

    return pl.pallas_call(
        kernel,
        out_shape=jax.ShapeDtypeStruct((NH, W, cout), out_dtype),
        grid=grid,
        in_specs=[pl.BlockSpec((tile_h, W, cin), lambda g: (g, 0, 0)),   # main strip (pipelined)
                  pl.BlockSpec(memory_space=pl.ANY),                     # same tensor, for halo DMA
                  pl.BlockSpec((cin, cmid), lambda g: (0, 0)),
                  pl.BlockSpec((1, cmid), lambda g: (0, 0)),
                  pl.BlockSpec((1, cmid), lambda g: (0, 0)),
                  pl.BlockSpec((9, cmid, cout), lambda g: (0, 0, 0)),
                  pl.BlockSpec((1, cout), lambda g: (0, 0)),
                  pl.BlockSpec((1, cout), lambda g: (0, 0))],
        out_specs=pl.BlockSpec((tile_h, W, cout), lambda g: (g, 0, 0)),
        scratch_shapes=[pltpu.VMEM((tile_h + 2, W + 2, cmid), m3d.dtype),
                        pltpu.VMEM((2, W, cin), m3d.dtype),
                        pltpu.SemaphoreType.DMA((2,))],
        compiler_params=_compiler_params(1),
        cost_estimate=cost,
    )(m3d, m3d, w1, s1, b1, w2, s2, b2)


# ----------------------------- parameter setup --------------------------------

def make_conv_params(key, cin, cout, k):
    kw, kg, kb, km = jax.random.split(key, 4)
    w = jax.random.normal(kw, (cout, cin, k, k), jnp.float32) / jnp.sqrt(cin * k * k)
    gamma = 1.0 + 0.1 * jax.random.normal(kg, (cout,), jnp.float32)
    beta = 0.1 * jax.random.normal(kb, (cout,), jnp.float32)
    running_mean = 0.05 * jax.random.normal(km, (cout,), jnp.float32)
    running_var = jnp.ones((cout,), jnp.float32)
    eps = 1e-5  # nn.BatchNorm2d default
    scale = gamma / jnp.sqrt(running_var + eps)
    bias = beta - running_mean * scale
    return {"w": w, "scale": scale, "bias": bias, "k": k}


def make_c3_params(key, c1, c2, n=1, e=0.5):
    c_ = int(c2 * e)
    keys = jax.random.split(key, 3 + 2 * n)
    params = {
        "cv1": make_conv_params(keys[0], c1, c_, 1),
        "cv2": make_conv_params(keys[1], c1, c_, 1),
        "cv3": make_conv_params(keys[2], 2 * c_, c2, 1),
        "m": [],
    }
    for i in range(n):
        params["m"].append({
            "cv1": make_conv_params(keys[3 + 2 * i], c_, c_, 1),   # Bottleneck.cv1 (e=1.0)
            "cv2": make_conv_params(keys[4 + 2 * i], c_, c_, 3),   # Bottleneck.cv2
        })
    return params


# ----------------------------- C3 forward (Pallas) -----------------------------

def c3_forward(x_nchw, params, shortcut=True, act_dtype=ACT_DTYPE,
               tile_m=DEFAULT_TILE_M, max_tile_h=MAX_TILE_H):
    N, c1, H, W = x_nchw.shape
    # TODO(synk): in a full network keep activations NHWC/bf16 across C3 blocks so this
    # transpose+cast HBM pass only happens at the network entry/exit.
    x = jnp.transpose(x_nchw, (0, 2, 3, 1)).astype(act_dtype)      # NCHW -> NHWC
    x2d = x.reshape(N * H * W, c1)

    # cv1 and cv2 share the input -> one fused kernel, one read of x.
    y1, y2 = pw_conv_dual(x2d, params["cv1"], params["cv2"],
                          out_dtype=act_dtype, tile_m=tile_m)
    c_ = params["cv1"]["w"].shape[0]

    # Bottlenecks: cv1 (1x1) fused into the 3x3 kernel; residual from the same strip.
    m = y1.reshape(N * H, W, c_)
    for bp in params["m"]:
        m = bottleneck_fused(m, H, bp["cv1"], bp["cv2"], shortcut,
                             out_dtype=act_dtype, max_tile_h=max_tile_h)

    # cv3 with the channel concat folded into the kernel (no HBM concat).
    out2d = pw_concat_conv(m.reshape(N * H * W, c_), y2, params["cv3"],
                           out_dtype=jnp.float32, tile_m=tile_m)
    out = out2d.reshape(N, H, W, -1)
    return jnp.transpose(out, (0, 3, 1, 2))                         # NHWC -> NCHW


# ----------------------------- pure-JAX reference ------------------------------
# Mirrors the kernel pipeline's bf16 boundary casts with f32 accumulation so the
# comparison validates the Pallas math (and tiling) rather than dtype policy.

def _conv_ref(x_nhwc, p, act_dtype):
    k = p["k"]
    w = jnp.transpose(p["w"], (2, 3, 1, 0)).astype(act_dtype)       # OIHW -> HWIO
    pad = k // 2
    y = jax.lax.conv_general_dilated(
        x_nhwc.astype(act_dtype), w, (1, 1), ((pad, pad), (pad, pad)),
        dimension_numbers=("NHWC", "HWIO", "NHWC"),
        preferred_element_type=jnp.float32)
    y = y * p["scale"] + p["bias"]
    return y * jax.nn.sigmoid(y)                                     # f32


def c3_reference(x_nchw, params, shortcut=True, act_dtype=ACT_DTYPE):
    x = jnp.transpose(x_nchw, (0, 2, 3, 1)).astype(act_dtype)
    y1 = _conv_ref(x, params["cv1"], act_dtype).astype(act_dtype)
    y2 = _conv_ref(x, params["cv2"], act_dtype).astype(act_dtype)
    m = y1
    for bp in params["m"]:
        t = _conv_ref(m, bp["cv1"], act_dtype).astype(act_dtype)
        y = _conv_ref(t, bp["cv2"], act_dtype)                       # f32
        if shortcut:
            y = y + m.astype(jnp.float32)
        m = y.astype(act_dtype)
    cat = jnp.concatenate([m, y2], axis=-1)
    out = _conv_ref(cat, params["cv3"], act_dtype)                   # f32
    return jnp.transpose(out, (0, 3, 1, 2))


# ----------------------------------- main --------------------------------------

if __name__ == "__main__":
    key = jax.random.PRNGKey(0)
    k_x, k_p = jax.random.split(key)

    N, c1, c2, H, W, n = 2, 8, 8, 16, 16, 1
    x = jax.random.normal(k_x, (N, c1, H, W), jnp.float32)           # NCHW input
    params = make_c3_params(k_p, c1, c2, n=n)

    # Small tile_m / max_tile_h so the test exercises a multi-step pipelined pw grid
    # (M=512 -> 4 tiles) and the H-strip + halo-DMA path (H=16 -> 2 strips/image).
    out = c3_forward(x, params, shortcut=True, tile_m=128, max_tile_h=8)
    out = jax.block_until_ready(out)
    assert out.shape == (N, c2, H, W), out.shape

    ref = jax.block_until_ready(c3_reference(x, params, shortcut=True))
    max_err = float(jnp.max(jnp.abs(out - ref)))
    assert max_err < 2e-2, f"max abs err {max_err}"

    print("KERNEL_OK")
</pallas_src>

<mosaic_0001>
module attributes {stable_mosaic.version = 11 : i64} {
  func.func @_pw_kernel(%arg0: i32, %arg1: memref<128x8xbf16, #tpu.memory_space<vmem>>, %arg2: memref<8x8xbf16, #tpu.memory_space<vmem>>, %arg3: memref<1x8xf32, #tpu.memory_space<vmem>>, %arg4: memref<1x8xf32, #tpu.memory_space<vmem>>, %arg5: memref<128x8xbf16, #tpu.memory_space<vmem>>) attributes {dimension_semantics = [#tpu.dimension_semantics<parallel>], iteration_bounds = array<i64: 4>, scalar_prefetch = 0 : i64, scratch_operands = 0 : i64, tpu.core_type = #tpu.core_type<tc>, window_params = [{transform_indices = @transform_0, window_bounds = array<i64: 128, 8>}, {pipeline_mode = #tpu.pipeline_mode<synchronous>, transform_indices = @transform_1, window_bounds = array<i64: 8, 8>}, {pipeline_mode = #tpu.pipeline_mode<synchronous>, transform_indices = @transform_2, window_bounds = array<i64: 1, 8>}, {pipeline_mode = #tpu.pipeline_mode<synchronous>, transform_indices = @transform_3, window_bounds = array<i64: 1, 8>}, {transform_indices = @transform_4, window_bounds = array<i64: 128, 8>}]} {
    %c0 = arith.constant 0 : index
    %c0_0 = arith.constant 0 : index
    %0 = vector.load %arg1[%c0, %c0_0] : memref<128x8xbf16, #tpu.memory_space<vmem>>, vector<128x8xbf16>
    %c0_1 = arith.constant 0 : index
    %c0_2 = arith.constant 0 : index
    %1 = vector.load %arg2[%c0_1, %c0_2] : memref<8x8xbf16, #tpu.memory_space<vmem>>, vector<8x8xbf16>
    %cst = arith.constant dense<0.000000e+00> : vector<128x8xf32>
    %2 = tpu.matmul %0, %1, %cst {dimension_numbers = #tpu.dot_dimension_numbers<[1], [0], [0], [1], [0, 0, 1, 1], [], []>} : vector<128x8xbf16>, vector<8x8xbf16>, vector<128x8xf32> -> vector<128x8xf32>
    %c0_3 = arith.constant 0 : index
    %c0_4 = arith.constant 0 : index
    %3 = vector.load %arg3[%c0_3, %c0_4] : memref<1x8xf32, #tpu.memory_space<vmem>>, vector<1x8xf32>
    %4 = vector.broadcast %3 : vector<1x8xf32> to vector<128x8xf32>
    %5 = arith.mulf %2, %4 : vector<128x8xf32>
    %c0_5 = arith.constant 0 : index
    %c0_6 = arith.constant 0 : index
    %6 = vector.load %arg4[%c0_5, %c0_6] : memref<1x8xf32, #tpu.memory_space<vmem>>, vector<1x8xf32>
    %7 = vector.broadcast %6 : vector<1x8xf32> to vector<128x8xf32>
    %8 = arith.addf %5, %7 : vector<128x8xf32>
    %9 = arith.negf %8 : vector<128x8xf32>
    %10 = math.exp %9 : vector<128x8xf32>
    %cst_7 = arith.constant 1.000000e+00 : f32
    %11 = vector.broadcast %cst_7 : f32 to vector<128x8xf32>
    %12 = arith.addf %11, %10 : vector<128x8xf32>
    %13 = arith.divf %11, %12 : vector<128x8xf32>
    %14 = arith.mulf %8, %13 : vector<128x8xf32>
    %15 = arith.truncf %14 : vector<128x8xf32> to vector<128x8xbf16>
    %c0_8 = arith.constant 0 : index
    %c0_9 = arith.constant 0 : index
    %16 = vector.load %arg5[%c0_8, %c0_9] : memref<128x8xbf16, #tpu.memory_space<vmem>>, vector<128x8xbf16>
    tpu.vector_store %arg5[%c0_8, %c0_9], %15 {strides = array<i32>} : memref<128x8xbf16, #tpu.memory_space<vmem>>, vector<128x8xbf16>,
    return
  }
  func.func @transform_0(%arg0: i32) -> (i32, i32) {
    %c0_i32 = arith.constant 0 : i32
    %c0_i32_0 = arith.constant 0 : i32
    return %arg0, %c0_i32 : i32, i32
  }
  func.func @transform_1(%arg0: i32) -> (i32, i32) {
    %c0_i32 = arith.constant 0 : i32
    %c0_i32_0 = arith.constant 0 : i32
    %c0_i32_1 = arith.constant 0 : i32
    return %c0_i32, %c0_i32_0 : i32, i32
  }
  func.func @transform_2(%arg0: i32) -> (i32, i32) {
    %c0_i32 = arith.constant 0 : i32
    %c0_i32_0 = arith.constant 0 : i32
    %c0_i32_1 = arith.constant 0 : i32
    return %c0_i32, %c0_i32_0 : i32, i32
  }
  func.func @transform_3(%arg0: i32) -> (i32, i32) {
    %c0_i32 = arith.constant 0 : i32
    %c0_i32_0 = arith.constant 0 : i32
    %c0_i32_1 = arith.constant 0 : i32
    return %c0_i32, %c0_i32_0 : i32, i32
  }
  func.func @transform_4(%arg0: i32) -> (i32, i32) {
    %c0_i32 = arith.constant 0 : i32
    %c0_i32_0 = arith.constant 0 : i32
    return %arg0, %c0_i32 : i32, i32
  }
}

</mosaic_0001>

<llo_original>
// kernel: tpu_custom_call.1
$region0: #{tpu_custom_call.1}
  #allocation0 [shape = 'u32[]', space=smem, size = 0x4, offset = 0x4, fixed_abs, tag = 'smem constant byte address 0x4 - core index']
  #allocation1 [shape = 'u32[144,128]{1,0:T(1,128)}', space=vmem, size = 0x12000, scoped, tag = 'internal scratch']
  %s0 = inlined_call_operand.vmem [shape: bf16[512,8], index: 0, kind: input, shape index: {}]
  %s1 = inlined_call_operand.vmem [shape: bf16[8,8], index: 1, kind: input, shape index: {}]
  %s2 = inlined_call_operand.vmem [shape: f32[1,8], index: 2, kind: input, shape index: {}]
  %s3 = inlined_call_operand.vmem [shape: f32[1,8], index: 3, kind: input, shape index: {}]
  %s4 = inlined_call_operand.vmem [shape: bf16[512,8], index: 4, kind: output, shape index: {}]
  %s5 = sld [smem:[#allocation0]]
  $region49: #{tpu_custom_call.1} parent=0
    _
  %s7 = ssub.s32 1, %s5
  %s8 = scalar_select 0, %s7, %s5
  loop: start=0, step=1, limit=6
  $region2: #{tpu_custom_call.1} parent=0 // loop_pre_header
    _
  $region3: #{tpu_custom_call.1} parent=0 // loop_header
    %s10 = sphi 0, %s14
    %p11 = scmp.ge.s32.totalorder %s10, 6
    %s20 = sphi 0, %s22
    %s23 = sphi 0, %s20
    %s24 = sphi 0, %s23
    %s40 = sphi 0, %s24
    %s44 = sphi 0, %s44
    %s46 = sphi 0, %s44
    %s47 = sphi 0, %s46
    %s61 = sphi 0, %s47
    %s65 = sphi 0, %s65
    %s67 = sphi 0, %s65
    %s68 = sphi 0, %s67
    %s82 = sphi 0, %s68
    %s86 = sphi 0, %s86
    %s88 = sphi 0, %s86
    %s89 = sphi 0, %s88
    %s103 = sphi 0, %s89
    %s109 = sphi 0, %s111
    %s112 = sphi 0, %s109
    %s113 = sphi 0, %s112
    %s129 = sphi 0, %s113
  $region4: #{tpu_custom_call.1} parent=0 // loop_header_branch
    %13 = sbr.rel (%p11) target = $region8
  $region5: #{tpu_custom_call.1} parent=0 // loop_body
    %s15 = ssub.s32 %s10, 1
    %s16 = ssub.s32 %s10, 2
    %s17 = sadd.s32 %s10, 1
    %s18 = ssub.s32 %s10, %s17
    %p19 = scmp.eq.s32.totalorder %s18, 0
    %s21 = sadd.s32 %s20, 1
    %s22 = scalar_select %p19, %s20, %s21
    %p25 = pneg %p19
    %p26 = scmp.eq.s32.totalorder %s10, 3
    %p27 = por %p25, %p26
    %p28 = scmp.ne.s32.totalorder %s20, %s23
    %p29 = scmp.eq.s32.totalorder %s10, 0
    %p30 = por %p28, %p29
    %p31 = scmp.ne.s32.totalorder %s20, %s23
    %p32 = scmp.eq.s32.totalorder %s15, 3
    %p33 = por %p31, %p32
    %p34 = scmp.ne.s32.totalorder %s23, %s24
    %p35 = scmp.eq.s32.totalorder %s15, 0
    %p36 = por %p34, %p35
    %p37 = scmp.ne.s32.totalorder %s23, %s24
    %p38 = scmp.eq.s32.totalorder %s16, 3
    %p39 = por %p37, %p38
    %p41 = scmp.ne.s32.totalorder %s24, %s40
    %p42 = scmp.eq.s32.totalorder %s16, 0
    %p43 = por %p41, %p42
    %s45 = sadd.s32 %s44, 1
    %p48 = scmp.eq.s32.totalorder %s10, 3
    %p49 = scmp.ne.s32.totalorder %s44, %s46
    %p50 = scmp.eq.s32.totalorder %s10, 0
    %p51 = por %p49, %p50
    %p52 = scmp.ne.s32.totalorder %s44, %s46
    %p53 = scmp.eq.s32.totalorder %s15, 3
    %p54 = por %p52, %p53
    %p55 = scmp.ne.s32.totalorder %s46, %s47
    %p56 = scmp.eq.s32.totalorder %s15, 0
    %p57 = por %p55, %p56
    %p58 = scmp.ne.s32.totalorder %s46, %s47
    %p59 = scmp.eq.s32.totalorder %s16, 3
    %p60 = por %p58, %p59
    %p62 = scmp.ne.s32.totalorder %s47, %s61
    %p63 = scmp.eq.s32.totalorder %s16, 0
    %p64 = por %p62, %p63
    %s66 = sadd.s32 %s65, 1
    %p69 = scmp.eq.s32.totalorder %s10, 3
    %p70 = scmp.ne.s32.totalorder %s65, %s67
    %p71 = scmp.eq.s32.totalorder %s10, 0
    %p72 = por %p70, %p71
    %p73 = scmp.ne.s32.totalorder %s65, %s67
    %p74 = scmp.eq.s32.totalorder %s15, 3
    %p75 = por %p73, %p74
    %p76 = scmp.ne.s32.totalorder %s67, %s68
    %p77 = scmp.eq.s32.totalorder %s15, 0
    %p78 = por %p76, %p77
    %p79 = scmp.ne.s32.totalorder %s67, %s68
    %p80 = scmp.eq.s32.totalorder %s16, 3
    %p81 = por %p79, %p80
    %p83 = scmp.ne.s32.totalorder %s68, %s82
    %p84 = scmp.eq.s32.totalorder %s16, 0
    %p85 = por %p83, %p84
    %s87 = sadd.s32 %s86, 1
    %p90 = scmp.eq.s32.totalorder %s10, 3
    %p91 = scmp.ne.s32.totalorder %s86, %s88
    %p92 = scmp.eq.s32.totalorder %s10, 0
    %p93 = por %p91, %p92
    %p94 = scmp.ne.s32.totalorder %s86, %s88
    %p95 = scmp.eq.s32.totalorder %s15, 3
    %p96 = por %p94, %p95
    %p97 = scmp.ne.s32.totalorder %s88, %s89
    %p98 = scmp.eq.s32.totalorder %s15, 0
    %p99 = por %p97, %p98
    %p100 = scmp.ne.s32.totalorder %s88, %s89
    %p101 = scmp.eq.s32.totalorder %s16, 3
    %p102 = por %p100, %p101
    %p104 = scmp.ne.s32.totalorder %s89, %s103
    %p105 = scmp.eq.s32.totalorder %s16, 0
    %p106 = por %p104, %p105
    %s107 = ssub.s32 %s10, %s17
    %p108 = scmp.eq.s32.totalorder %s107, 0
    %s110 = sadd.s32 %s109, 1
    %s111 = scalar_select %p108, %s109, %s110
    %p114 = pneg %p108
    %p115 = scmp.eq.s32.totalorder %s10, 3
    %p116 = por %p114, %p115
    %p117 = scmp.ne.s32.totalorder %s109, %s112
    %p118 = scmp.eq.s32.totalorder %s10, 0
    %p119 = por %p117, %p118
    %p120 = scmp.ne.s32.totalorder %s109, %s112
    %p121 = scmp.eq.s32.totalorder %s15, 3
    %p122 = por %p120, %p121
    %p123 = scmp.ne.s32.totalorder %s112, %s113
    %p124 = scmp.eq.s32.totalorder %s15, 0
    %p125 = por %p123, %p124
    %p126 = scmp.ne.s32.totalorder %s112, %s113
    %p127 = scmp.eq.s32.totalorder %s16, 3
    %p128 = por %p126, %p127
    %p130 = scmp.ne.s32.totalorder %s113, %s129
    %p131 = scmp.eq.s32.totalorder %s16, 0
    %p132 = por %p130, %p131
    %p133 = scmp.le.s32.totalorder 1, %s10
    %p134 = scmp.lt.s32.totalorder %s10, 5
    %p135 = pnand %p133, %p134
    %p136 = pneg %p135
    // Predicated region
    $region9: #{tpu_custom_call.1} parent=5 // pred_check
      _
    $region10: #{tpu_custom_call.1} parent=5 // pred_check_branch
      %138 = sbr.rel (%p135) target = $region12
    $region11: #{tpu_custom_call.1} parent=5 // pred_region
      %s139 = ssub.s32 %s10, 1
      // Predicated region
      $region13: #{tpu_custom_call.1} parent=11 // pred_check
        %p140 = pneg %p57
      $region14: #{tpu_custom_call.1} parent=11 // pred_check_branch
        %142 = sbr.rel (%p140) target = $region16
      $region15: #{tpu_custom_call.1} parent=11 // pred_region
        _
      $region16: #{tpu_custom_call.1} parent=11 // pred_fallthru
        _
      // Predicated region
      $region17: #{tpu_custom_call.1} parent=11 // pred_check
        %p143 = pneg %p78
      $region18: #{tpu_custom_call.1} parent=11 // pred_check_branch
        %145 = sbr.rel (%p143) target = $region20
      $region19: #{tpu_custom_call.1} parent=11 // pred_region
        _
      $region20: #{tpu_custom_call.1} parent=11 // pred_fallthru
        _
      // Predicated region
      $region21: #{tpu_custom_call.1} parent=11 // pred_check
        %p146 = pneg %p99
      $region22: #{tpu_custom_call.1} parent=11 // pred_check_branch
        %148 = sbr.rel (%p146) target = $region24
      $region23: #{tpu_custom_call.1} parent=11 // pred_region
        _
      $region24: #{tpu_custom_call.1} parent=11 // pred_fallthru
        _
    $region12: #{tpu_custom_call.1} parent=5 // pred_fallthru
      _
    %p149 = scmp.lt.s32.totalorder %s10, 4
    // Predicated region
    $region25: #{tpu_custom_call.1} parent=5 // pred_check
      %p150 = pneg %p149
    $region26: #{tpu_custom_call.1} parent=5 // pred_check_branch
      %152 = sbr.rel (%p150) target = $region28
    $region27: #{tpu_custom_call.1} parent=5 // pred_region
      // Predicated region
      $region29: #{tpu_custom_call.1} parent=27 // pred_check
        %p153 = pneg %p30
      $region30: #{tpu_custom_call.1} parent=27 // pred_check_branch
        %155 = sbr.rel (%p153) target = $region32
      $region31: #{tpu_custom_call.1} parent=27 // pred_region
        %s156 = smul.u32 16, %s10
        %p157 = scmp.lt.s32.totalorder %s156, 63
        %s158 = scalar_select %p157, %s156, 63
        %s159 = smul.addr %s158, 4
        %s160 = scalar_lea.vmem %s0, %s159
        %s161 = smul.u32 16, %s10
      $region32: #{tpu_custom_call.1} parent=27 // pred_fallthru
        _
    $region28: #{tpu_custom_call.1} parent=5 // pred_fallthru
      _
    %p162 = scmp.le.s32.totalorder 1, %s10
    %p163 = scmp.lt.s32.totalorder %s10, 5
    %p164 = pnand %p162, %p163
    %p165 = pneg %p164
    // Predicated region
    $region33: #{tpu_custom_call.1} parent=5 // pred_check
      _
    $region34: #{tpu_custom_call.1} parent=5 // pred_check_branch
      %167 = sbr.rel (%p164) target = $region36
    $region35: #{tpu_custom_call.1} parent=5 // pred_region
      %s168 = ssub.s32 %s10, 1
      %s169 = smul.u32 16, %s15
      %p170 = scmp.lt.s32.totalorder %s169, 63
      %s171 = scalar_select %p170, %s169, 63
      %s172 = smul.addr %s171, 4
      %s173 = scalar_lea.vmem %s0, %s172
      %p174 = pneg %p36
      %p175 = pneg %p33
      %p176 = pneg %p57
      %p177 = pneg %p54
      %p178 = pneg %p78
      %p179 = pneg %p75
      %p180 = pneg %p99
      %p181 = pneg %p96
      %p182 = pneg %p125
      %p183 = pneg %p122
      %s184 = smul.u32 16, %s15
      %p185 = scmp.lt.s32.totalorder %s184, 63
      %s186 = scalar_select %p185, %s184, 63
      %s187 = smul.addr %s186, 4
      %s188 = scalar_lea.vmem %s4, %s187
      %s189 = smul.u32 16, %s15
      %p190 = scmp.lt.s32.totalorder %s189, 63
      %s191 = scalar_select %p190, %s189, 63
      %s192 = smul.addr %s191, 4
      %s193 = scalar_lea.vmem %s0, %s192
      %s194 = smul.u32 16, %s15
      %s195 = smul.u32 16, %s15
      %p196 = scmp.lt.s32.totalorder %s195, 63
      %s197 = scalar_select %p196, %s195, 63
      %s198 = smul.addr %s197, 4
      %s199 = scalar_lea.vmem %s4, %s198
      %s200 = smul.u32 16, %s15
      %v202 = vld [vmem:[%s193] sm:$0xf]
      %v203 = vld [vmem:[%s193 + $0x4] sm:$0xf]
      %v204 = vld [vmem:[%s193 + $0x8] sm:$0xf]
      %v205 = vld [vmem:[%s193 + $0xc] sm:$0xf]
      %v206 = vld [vmem:[%s193 + $0x10] sm:$0xf]
      %v207 = vld [vmem:[%s193 + $0x14] sm:$0xf]
      %v208 = vld [vmem:[%s193 + $0x18] sm:$0xf]
      %v209 = vld [vmem:[%s193 + $0x1c] sm:$0xf]
      %v210 = vld [vmem:[%s193 + $0x20] sm:$0xf]
      %v211 = vld [vmem:[%s193 + $0x24] sm:$0xf]
      %v212 = vld [vmem:[%s193 + $0x28] sm:$0xf]
      %v213 = vld [vmem:[%s193 + $0x2c] sm:$0xf]
      %v214 = vld [vmem:[%s193 + $0x30] sm:$0xf]
      %v215 = vld [vmem:[%s193 + $0x34] sm:$0xf]
      %v216 = vld [vmem:[%s193 + $0x38] sm:$0xf]
      %v217 = vld [vmem:[%s193 + $0x3c] sm:$0xf]
      %v218 = vld [vmem:[%s1] sm:$0xf]
      %v235 = vunpack.c.l.b16 %v202
      %v236 = vunpack.c.l.b16 %v203
      %v237 = vunpack.c.l.b16 %v204
      %v238 = vunpack.c.l.b16 %v205
      %v239 = vunpack.c.l.b16 %v206
      %v240 = vunpack.c.l.b16 %v207
      %v241 = vunpack.c.l.b16 %v208
      %v242 = vunpack.c.l.b16 %v209
      %v243 = vunpack.c.l.b16 %v210
      %v244 = vunpack.c.l.b16 %v211
      %v245 = vunpack.c.l.b16 %v212
      %v246 = vunpack.c.l.b16 %v213
      %v247 = vunpack.c.l.b16 %v214
      %v248 = vunpack.c.l.b16 %v215
      %v249 = vunpack.c.l.b16 %v216
      %v250 = vunpack.c.l.b16 %v217
      %v251 = vpack.c.b16 %v236, %v235
      %v252 = vpack.c.b16 %v238, %v237
      %v253 = vpack.c.b16 %v240, %v239
      %v254 = vpack.c.b16 %v242, %v241
      %v255 = vpack.c.b16 %v244, %v243
      %v256 = vpack.c.b16 %v246, %v245
      %v257 = vpack.c.b16 %v248, %v247
      %v258 = vpack.c.b16 %v250, %v249
      %vm259 = vcmask 64512
      %v261 = vsel %vm259, %v251, 0
      %v264 = vsel %vm259, %v252, 0
      %v267 = vsel %vm259, %v253, 0
      %v270 = vsel %vm259, %v254, 0
      %v273 = vsel %vm259, %v255, 0
      %v276 = vsel %vm259, %v256, 0
      %v279 = vsel %vm259, %v257, 0
      %v282 = vsel %vm259, %v258, 0
      %vm284 = vcmask 1043456
      %v286 = vsel %vm284, %v218, 0
      %288 = vmatprep.subr.bf16.mxu0 0
      %289 = vmatpush1.bf16.msra.mxu0 0
      %290 = vmatprep.subr.bf16.mxu0 0
      %291 = vmatpush1.bf16.msra.mxu0 0
      %292 = vmatprep.subr.bf16.mxu0 0
      %293 = vmatpush1.bf16.msra.mxu0 0
      %294 = vmatprep.subr.bf16.mxu0 0
      %295 = vmatpush1.bf16.msra.mxu0 0
      %296 = vmatprep.subr.bf16.mxu0 0
      %297 = vmatpush1.bf16.msra.mxu0 0
      %298 = vmatprep.subr.bf16.mxu0 0
      %299 = vmatpush1.bf16.msra.mxu0 0
      %300 = vmatprep.subr.bf16.mxu0 0
      %301 = vmatpush1.bf16.msra.mxu0 0
      %302 = vmatprep.subr.bf16.mxu0 0
      %303 = vmatpush1.bf16.msra.mxu0 %v286
      %304 = vmatprep.subr.bf16.mxu0 0
      %305 = vmatpush2.bf16.msra.mxu0 0
      %306 = vmatprep.subr.bf16.mxu0 0
      %307 = vmatpush2.bf16.msra.mxu0 0
      %308 = vmatprep.subr.bf16.mxu0 0
      %309 = vmatpush2.bf16.msra.mxu0 0
      %310 = vmatprep.subr.bf16.mxu0 0
      %311 = vmatpush2.bf16.msra.mxu0 0
      %312 = vmatprep.subr.bf16.mxu0 0
      %313 = vmatpush2.bf16.msra.mxu0 0
      %314 = vmatprep.subr.bf16.mxu0 0
      %315 = vmatpush2.bf16.msra.mxu0 0
      %316 = vmatprep.subr.bf16.mxu0 0
      %317 = vmatpush2.bf16.msra.mxu0 0
      %318 = vmatprep.subr.bf16.mxu0 0
      %319 = vmatpush2.bf16.msra.mxu0 0
      %320 = vmatprep.mubr.bf16.mxu0 0
      %321 = vmatmul.mubr.bf16.gmra.mxu0 %v261
      %v322 = vpop.f32.mrf.mxu0
      %v323 = vadd.f32 0.0, %v322
      %v324 = vpop.f32.mrf.mxu0
      %v325 = vpop.f32.mrf.mxu0
      %v326 = vadd.f32 0.0, %v325
      %v327 = vpop.f32.mrf.mxu0
      %328 = vmatprep.mubr.bf16.mxu0 0
      %329 = vmatmul.mubr.bf16.gmra.mxu0 %v264
      %v330 = vpop.f32.mrf.mxu0
      %v331 = vadd.f32 0.0, %v330
      %v332 = vpop.f32.mrf.mxu0
      %v333 = vpop.f32.mrf.mxu0
      %v334 = vadd.f32 0.0, %v333
      %v335 = vpop.f32.mrf.mxu0
      %336 = vmatprep.mubr.bf16.mxu0 0
      %337 = vmatmul.mubr.bf16.gmra.mxu0 %v267
      %v338 = vpop.f32.mrf.mxu0
      %v339 = vadd.f32 0.0, %v338
      %v340 = vpop.f32.mrf.mxu0
      %v341 = vpop.f32.mrf.mxu0
      %v342 = vadd.f32 0.0, %v341
      %v343 = vpop.f32.mrf.mxu0
      %344 = vmatprep.mubr.bf16.mxu0 0
      %345 = vmatmul.mubr.bf16.gmra.mxu0 %v270
      %v346 = vpop.f32.mrf.mxu0
      %v347 = vadd.f32 0.0, %v346
      %v348 = vpop.f32.mrf.mxu0
      %v349 = vpop.f32.mrf.mxu0
      %v350 = vadd.f32 0.0, %v349
      %v351 = vpop.f32.mrf.mxu0
      %352 = vmatprep.mubr.bf16.mxu0 0
      %353 = vmatmul.mubr.bf16.gmra.mxu0 %v273
      %v354 = vpop.f32.mrf.mxu0
      %v355 = vadd.f32 0.0, %v354
      %v356 = vpop.f32.mrf.mxu0
      %v357 = vpop.f32.mrf.mxu0
      %v358 = vadd.f32 0.0, %v357
      %v359 = vpop.f32.mrf.mxu0
      %360 = vmatprep.mubr.bf16.mxu0 0
      %361 = vmatmul.mubr.bf16.gmra.mxu0 %v276
      %v362 = vpop.f32.mrf.mxu0
      %v363 = vadd.f32 0.0, %v362
      %v364 = vpop.f32.mrf.mxu0
      %v365 = vpop.f32.mrf.mxu0
      %v366 = vadd.f32 0.0, %v365
      %v367 = vpop.f32.mrf.mxu0
      %368 = vmatprep.mubr.bf16.mxu0 0
      %369 = vmatmul.mubr.bf16.gmra.mxu0 %v279
      %v370 = vpop.f32.mrf.mxu0
      %v371 = vadd.f32 0.0, %v370
      %v372 = vpop.f32.mrf.mxu0
      %v373 = vpop.f32.mrf.mxu0
      %v374 = vadd.f32 0.0, %v373
      %v375 = vpop.f32.mrf.mxu0
      %376 = vmatprep.mubr.bf16.mxu0 0
      %377 = vmatmul.mubr.bf16.gmra.mxu0 %v282
      %v378 = vpop.f32.mrf.mxu0
      %v379 = vadd.f32 0.0, %v378
      %v380 = vpop.f32.mrf.mxu0
      %v381 = vpop.f32.mrf.mxu0
      %v382 = vadd.f32 0.0, %v381
      %v383 = vpop.f32.mrf.mxu0
      %384 = vdwg.mxu0
      %v385 = vld [vmem:[%s2] sm:$0x1]
      %v387 = vlaneseq
      %v388 = vshrl.u32 %v387, 7
      %v389 = vsub.s32 0, %v388
      %v390 = vrot.slane %v385, %v389
      %v392 = vmul.f32 %v323, %v390
      %v393 = vmul.f32 %v326, %v390
      %v394 = vmul.f32 %v331, %v390
      %v395 = vmul.f32 %v334, %v390
      %v396 = vmul.f32 %v339, %v390
      %v397 = vmul.f32 %v342, %v390
      %v398 = vmul.f32 %v347, %v390
      %v399 = vmul.f32 %v350, %v390
      %v400 = vmul.f32 %v355, %v390
      %v401 = vmul.f32 %v358, %v390
      %v402 = vmul.f32 %v363, %v390
      %v403 = vmul.f32 %v366, %v390
      %v404 = vmul.f32 %v371, %v390
      %v405 = vmul.f32 %v374, %v390
      %v406 = vmul.f32 %v379, %v390
      %v407 = vmul.f32 %v382, %v390
      %v408 = vld [vmem:[%s3] sm:$0x1]
      %v410 = vlaneseq
      %v411 = vshrl.u32 %v410, 7
      %v412 = vsub.s32 0, %v411
      %v413 = vrot.slane %v408, %v412
      %v415 = vadd.f32 %v392, %v413
      %v416 = vadd.f32 %v393, %v413
      %v417 = vadd.f32 %v394, %v413
      %v418 = vadd.f32 %v395, %v413
      %v419 = vadd.f32 %v396, %v413
      %v420 = vadd.f32 %v397, %v413
      %v421 = vadd.f32 %v398, %v413
      %v422 = vadd.f32 %v399, %v413
      %v423 = vadd.f32 %v400, %v413
      %v424 = vadd.f32 %v401, %v413
      %v425 = vadd.f32 %v402, %v413
      %v426 = vadd.f32 %v403, %v413
      %v427 = vadd.f32 %v404, %v413
      %v428 = vadd.f32 %v405, %v413
      %v429 = vadd.f32 %v406, %v413
      %v430 = vadd.f32 %v407, %v413
      %v431 = vxor.u32 %v415, 2147483648
      %v432 = vxor.u32 %v416, 2147483648
      %v433 = vxor.u32 %v417, 2147483648
      %v434 = vxor.u32 %v418, 2147483648
      %v435 = vxor.u32 %v419, 2147483648
      %v436 = vxor.u32 %v420, 2147483648
      %v437 = vxor.u32 %v421, 2147483648
      %v438 = vxor.u32 %v422, 2147483648
      %v439 = vxor.u32 %v423, 2147483648
      %v440 = vxor.u32 %v424, 2147483648
      %v441 = vxor.u32 %v425, 2147483648
      %v442 = vxor.u32 %v426, 2147483648
      %v443 = vxor.u32 %v427, 2147483648
      %v444 = vxor.u32 %v428, 2147483648
      %v445 = vxor.u32 %v429, 2147483648
      %v446 = vxor.u32 %v430, 2147483648
      %v447 = vmul.f32 %v431, 1.442695
      %v448 = vpow.pop %v447
      %v449 = vmul.f32 %v432, 1.442695
      %v450 = vpow.pop %v449
      %v451 = vmul.f32 %v433, 1.442695
      %v452 = vpow.pop %v451
      %v453 = vmul.f32 %v434, 1.442695
      %v454 = vpow.pop %v453
      %v455 = vmul.f32 %v435, 1.442695
      %v456 = vpow.pop %v455
      %v457 = vmul.f32 %v436, 1.442695
      %v458 = vpow.pop %v457
      %v459 = vmul.f32 %v437, 1.442695
      %v460 = vpow.pop %v459
      %v461 = vmul.f32 %v438, 1.442695
      %v462 = vpow.pop %v461
      %v463 = vmul.f32 %v439, 1.442695
      %v464 = vpow.pop %v463
      %v465 = vmul.f32 %v440, 1.442695
      %v466 = vpow.pop %v465
      %v467 = vmul.f32 %v441, 1.442695
      %v468 = vpow.pop %v467
      %v469 = vmul.f32 %v442, 1.442695
      %v470 = vpow.pop %v469
      %v471 = vmul.f32 %v443, 1.442695
      %v472 = vpow.pop %v471
      %v473 = vmul.f32 %v444, 1.442695
      %v474 = vpow.pop %v473
      %v475 = vmul.f32 %v445, 1.442695
      %v476 = vpow.pop %v475
      %v477 = vmul.f32 %v446, 1.442695
      %v478 = vpow.pop %v477
      %v479 = vadd.f32 %v448, 1.0
      %v480 = vadd.f32 %v450, 1.0
      %v481 = vadd.f32 %v452, 1.0
      %v482 = vadd.f32 %v454, 1.0
      %v483 = vadd.f32 %v456, 1.0
      %v484 = vadd.f32 %v458, 1.0
      %v485 = vadd.f32 %v460, 1.0
      %v486 = vadd.f32 %v462, 1.0
      %v487 = vadd.f32 %v464, 1.0
      %v488 = vadd.f32 %v466, 1.0
      %v489 = vadd.f32 %v468, 1.0
      %v490 = vadd.f32 %v470, 1.0
      %v491 = vadd.f32 %v472, 1.0
      %v492 = vadd.f32 %v474, 1.0
      %v493 = vadd.f32 %v476, 1.0
      %v494 = vadd.f32 %v478, 1.0
      %v495 = vrcp.pop %v479
      %v496 = vmul.f32 1.0, %v495
      %v497 = vrcp.pop %v480
      %v498 = vmul.f32 1.0, %v497
      %v499 = vrcp.pop %v481
      %v500 = vmul.f32 1.0, %v499
      %v501 = vrcp.pop %v482
      %v502 = vmul.f32 1.0, %v501
      %v503 = vrcp.pop %v483
      %v504 = vmul.f32 1.0, %v503
      %v505 = vrcp.pop %v484
      %v506 = vmul.f32 1.0, %v505
      %v507 = vrcp.pop %v485
      %v508 = vmul.f32 1.0, %v507
      %v509 = vrcp.pop %v486
      %v510 = vmul.f32 1.0, %v509
      %v511 = vrcp.pop %v487
      %v512 = vmul.f32 1.0, %v511
      %v513 = vrcp.pop %v488
      %v514 = vmul.f32 1.0, %v513
      %v515 = vrcp.pop %v489
      %v516 = vmul.f32 1.0, %v515
      %v517 = vrcp.pop %v490
      %v518 = vmul.f32 1.0, %v517
      %v519 = vrcp.pop %v491
      %v520 = vmul.f32 1.0, %v519
      %v521 = vrcp.pop %v492
      %v522 = vmul.f32 1.0, %v521
      %v523 = vrcp.pop %v493
      %v524 = vmul.f32 1.0, %v523
      %v525 = vrcp.pop %v494
      %v526 = vmul.f32 1.0, %v525
      %v527 = vmul.f32 %v415, %v496
      %v528 = vmul.f32 %v416, %v498
      %v529 = vmul.f32 %v417, %v500
      %v530 = vmul.f32 %v418, %v502
      %v531 = vmul.f32 %v419, %v504
      %v532 = vmul.f32 %v420, %v506
      %v533 = vmul.f32 %v421, %v508
      %v534 = vmul.f32 %v422, %v510
      %v535 = vmul.f32 %v423, %v512
      %v536 = vmul.f32 %v424, %v514
      %v537 = vmul.f32 %v425, %v516
      %v538 = vmul.f32 %v426, %v518
      %v539 = vmul.f32 %v427, %v520
      %v540 = vmul.f32 %v428, %v522
      %v541 = vmul.f32 %v429, %v524
      %v542 = vmul.f32 %v430, %v526
      %v543 = vpack.c.bf16 %v528, %v527
      %v544 = vpack.c.bf16 %v530, %v529
      %v545 = vpack.c.bf16 %v532, %v531
      %v546 = vpack.c.bf16 %v534, %v533
      %v547 = vpack.c.bf16 %v536, %v535
      %v548 = vpack.c.bf16 %v538, %v537
      %v549 = vpack.c.bf16 %v540, %v539
      %v550 = vpack.c.bf16 %v542, %v541
      %v559 = vunpack.c.l.b16 %v543
      %v560 = vunpack.c.h.b16 %v543
      %v561 = vunpack.c.l.b16 %v544
      %v562 = vunpack.c.h.b16 %v544
      %v563 = vunpack.c.l.b16 %v545
      %v564 = vunpack.c.h.b16 %v545
      %v565 = vunpack.c.l.b16 %v546
      %v566 = vunpack.c.h.b16 %v546
      %v567 = vunpack.c.l.b16 %v547
      %v568 = vunpack.c.h.b16 %v547
      %v569 = vunpack.c.l.b16 %v548
      %v570 = vunpack.c.h.b16 %v548
      %v571 = vunpack.c.l.b16 %v549
      %v572 = vunpack.c.h.b16 %v549
      %v573 = vunpack.c.l.b16 %v550
      %v574 = vunpack.c.h.b16 %v550
      %v575 = vpack.c.b16 %v559, %v559
      %v576 = vpack.c.b16 %v560, %v560
      %v577 = vpack.c.b16 %v561, %v561
      %v578 = vpack.c.b16 %v562, %v562
      %v579 = vpack.c.b16 %v563, %v563
      %v580 = vpack.c.b16 %v564, %v564
      %v581 = vpack.c.b16 %v565, %v565
      %v582 = vpack.c.b16 %v566, %v566
      %v583 = vpack.c.b16 %v567, %v567
      %v584 = vpack.c.b16 %v568, %v568
      %v585 = vpack.c.b16 %v569, %v569
      %v586 = vpack.c.b16 %v570, %v570
      %v587 = vpack.c.b16 %v571, %v571
      %v588 = vpack.c.b16 %v572, %v572
      %v589 = vpack.c.b16 %v573, %v573
      %v590 = vpack.c.b16 %v574, %v574
      %vm607 = vcmask 60416
      %608 = vst.msk [vmem:[%s199] sm:$0xf] %vm607, %v575
      %609 = vst.msk [vmem:[%s199 + $0x4] sm:$0xf] %vm607, %v576
      %610 = vst.msk [vmem:[%s199 + $0x8] sm:$0xf] %vm607, %v577
      %611 = vst.msk [vmem:[%s199 + $0xc] sm:$0xf] %vm607, %v578
      %612 = vst.msk [vmem:[%s199 + $0x10] sm:$0xf] %vm607, %v579
      %613 = vst.msk [vmem:[%s199 + $0x14] sm:$0xf] %vm607, %v580
      %614 = vst.msk [vmem:[%s199 + $0x18] sm:$0xf] %vm607, %v581
      %615 = vst.msk [vmem:[%s199 + $0x1c] sm:$0xf] %vm607, %v582
      %616 = vst.msk [vmem:[%s199 + $0x20] sm:$0xf] %vm607, %v583
      %617 = vst.msk [vmem:[%s199 + $0x24] sm:$0xf] %vm607, %v584
      %618 = vst.msk [vmem:[%s199 + $0x28] sm:$0xf] %vm607, %v585
      %619 = vst.msk [vmem:[%s199 + $0x2c] sm:$0xf] %vm607, %v586
      %620 = vst.msk [vmem:[%s199 + $0x30] sm:$0xf] %vm607, %v587
      %621 = vst.msk [vmem:[%s199 + $0x34] sm:$0xf] %vm607, %v588
      %622 = vst.msk [vmem:[%s199 + $0x38] sm:$0xf] %vm607, %v589
      %623 = vst.msk [vmem:[%s199 + $0x3c] sm:$0xf] %vm607, %v590
      %s624 = smul.u32 16, %s15
      %p625 = scmp.lt.s32.totalorder %s624, 63
      %s626 = scalar_select %p625, %s624, 63
      %s627 = smul.addr %s626, 4
      %s628 = scalar_lea.vmem %s4, %s627
      // Predicated region
      $region37: #{tpu_custom_call.1} parent=35 // pred_check
        %p629 = pneg %p122
      $region38: #{tpu_custom_call.1} parent=35 // pred_check_branch
        %631 = sbr.rel (%p629) target = $region40
      $region39: #{tpu_custom_call.1} parent=35 // pred_region
        %s632 = smul.u32 16, %s15
      $region40: #{tpu_custom_call.1} parent=35 // pred_fallthru
        _
    $region36: #{tpu_custom_call.1} parent=5 // pred_fallthru
      _
    %p633 = scmp.le.s32.totalorder 2, %s10
    // Predicated region
    $region41: #{tpu_custom_call.1} parent=5 // pred_check
      %p634 = pneg %p633
    $region42: #{tpu_custom_call.1} parent=5 // pred_check_branch
      %636 = sbr.rel (%p634) target = $region44
    $region43: #{tpu_custom_call.1} parent=5 // pred_region
      %s637 = ssub.s32 %s10, 2
      // Predicated region
      $region45: #{tpu_custom_call.1} parent=43 // pred_check
        %p638 = pneg %p128
      $region46: #{tpu_custom_call.1} parent=43 // pred_check_branch
        %640 = sbr.rel (%p638) target = $region48
      $region47: #{tpu_custom_call.1} parent=43 // pred_region
        %s641 = smul.u32 16, %s16
        %p642 = scmp.lt.s32.totalorder %s641, 63
        %s643 = scalar_select %p642, %s641, 63
        %s644 = smul.addr %s643, 4
        %s645 = scalar_lea.vmem %s4, %s644
      $region48: #{tpu_custom_call.1} parent=43 // pred_fallthru
        _
    $region44: #{tpu_custom_call.1} parent=5 // pred_fallthru
      _
  $region6: #{tpu_custom_call.1} parent=0 // loop_footer
    %s14 = sadd.s32 1, %s10
  $region7: #{tpu_custom_call.1} parent=0 // loop_footer_branch
    %9 = sbr.rel target = $region3
  $region8: #{tpu_custom_call.1} parent=0 // loop_exit
    _

</llo_original>
